<compile_context>
chip_gen: v6e
topology: v6e:2x2x1
jax: 0.10.0
libtpu: 0.0.40
codegen_flags: <defaults>
</compile_context>

<pallas_src>
import jax
import jax.numpy as jnp
from jax.experimental import pallas as pl
from jax.experimental.pallas import tpu as pltpu


def _copy_kernel(src_ref, dst_ref):
    dst_ref[...] = src_ref[...]


def _device_tuning():
    """Return (block_bytes_target, vmem_limit_bytes, use_core_parallel)."""
    kind = ""
    try:
        kind = jax.devices()[0].device_kind.lower()
    except Exception:
        pass
    if "v5" in kind and ("lite" in kind or "5e" in kind):
        # v5e: 0.82 TB/s HBM — 2 MiB blocks already amortize step overhead.
        return (2 << 20, 32 << 20, False)
    if "v6" in kind:
        # v6e: 128 MiB VMEM, 1.4 TB/s HBM — 4 MiB blocks, ample headroom.
        return (4 << 20, 64 << 20, False)
    if "7" in kind:
        # v7x: 64 MiB VMEM, 3.2 TB/s HBM — bigger blocks to hide 0.35 µs/step,
        # explicit limit under the 64 MiB physical cap; shard across 2 TCs.
        return (8 << 20, 40 << 20, True)
    # Unknown chip: safe everywhere (4 MiB x 2 bufs x (in+out) = 16 MiB).
    return (4 << 20, 40 << 20, False)


def _pick_lanes(n_elems: int):
    """Largest 128-multiple lane width that exactly divides n_elems, or None."""
    for cand in (8192, 4096, 2048, 1024, 512, 256, 128):
        if n_elems % cand == 0:
            return cand
    return None


def _pick_block_rows(rows: int, lanes: int, itemsize: int, block_bytes: int):
    """Rows per block: ~block_bytes, sublane-pack aligned, prefer even divisor."""
    target = max(1, block_bytes // (lanes * itemsize))
    if rows <= target:
        return rows  # single block == full array extent (always legal)
    pack = max(8, 32 // itemsize)  # sublane packing: 8 f32 / 16 bf16 / 32 int8
    target = max(pack, (target // pack) * pack)
    # Prefer a block_rows that evenly divides rows -> no masked tail block.
    cand = target
    while cand >= pack:
        if rows % cand == 0:
            return cand
        cand -= pack
    return target  # fall back: last block is masked (correct, slightly slower)


def _dim_semantics(core_parallel: bool):
    if core_parallel and hasattr(pltpu, "CORE_PARALLEL"):
        return (pltpu.CORE_PARALLEL,)
    return ("parallel",)


def _run_copy(flat2d, rows, lanes, block_rows, dim_sem, vmem_limit):
    spec = pl.BlockSpec((block_rows, lanes), lambda i: (i, 0))
    return pl.pallas_call(
        _copy_kernel,
        out_shape=jax.ShapeDtypeStruct((rows, lanes), flat2d.dtype),
        grid=(pl.cdiv(rows, block_rows),),
        in_specs=[spec],
        out_specs=spec,
        compiler_params=pltpu.CompilerParams(
            dimension_semantics=dim_sem,
            vmem_limit_bytes=vmem_limit,
        ),
    )(flat2d)


def _pallas_identity_copy(img: jax.Array) -> jax.Array:
    """Materialized copy of `img` via a lane-dense tiled Pallas kernel."""
    n = img.size
    if n == 0:
        return img
    itemsize = jnp.dtype(img.dtype).itemsize
    block_bytes, vmem_limit, core_par = _device_tuning()

    lanes = _pick_lanes(n)
    if lanes is not None:
        padded_n = n
    else:
        # Pad-to-lane-multiple path: keep the kernel lane-dense and tiled,
        # pad/slice are cheap XLA ops on the wrapper side.
        lanes = 512 if n >= 512 else 128
        padded_n = ((n + lanes - 1) // lanes) * lanes

    rows = padded_n // lanes
    block_rows = _pick_block_rows(rows, lanes, itemsize, block_bytes)

    flat = img.reshape(-1)
    if padded_n != n:
        flat = jnp.pad(flat, (0, padded_n - n))
    flat2d = flat.reshape(rows, lanes)

    dim_sem = _dim_semantics(core_par)
    try:
        out2d = _run_copy(flat2d, rows, lanes, block_rows, dim_sem, vmem_limit)
    except Exception:
        # Fall back to plain "parallel" semantics if CORE_PARALLEL is rejected
        # on this chip / jax version.
        if dim_sem != ("parallel",):
            out2d = _run_copy(flat2d, rows, lanes, block_rows, ("parallel",),
                              vmem_limit)
        else:
            raise

    out = out2d.reshape(-1)
    if padded_n != n:
        out = out[:n]
    return out.reshape(img.shape)


def image_concat_embedder(img: jax.Array, materialize: bool = False) -> jax.Array:
    """Pallas equivalent of ImageConcatEmbedder.forward(img) == img.

    Default (fast) path: return the input directly — no kernel, no HBM traffic.
    materialize=True: produce a fresh buffer via the lane-dense copy kernel.
    """
    if not materialize:
        return img
    return _pallas_identity_copy(img)


if __name__ == "__main__":
    key = jax.random.PRNGKey(0)
    k1, k2 = jax.random.split(key)

    # Small NCHW conditioning image: batch=2, channels=4, spatial=16x16.
    img = jax.random.normal(k1, (2, 4, 16, 16), dtype=jnp.float32)

    # Fast (no-kernel) path — exact module semantics.
    out_fast = image_concat_embedder(img)
    jax.block_until_ready(out_fast)
    assert out_fast.shape == img.shape and out_fast.dtype == img.dtype
    assert bool(jnp.array_equal(out_fast, img))

    # Materialized-copy path exercising the lane-dense Pallas kernel
    # (element count 2048 — exact 128-multiple path).
    out_copy = image_concat_embedder(img, materialize=True)
    jax.block_until_ready(out_copy)
    assert out_copy.shape == img.shape and out_copy.dtype == img.dtype
    assert bool(jnp.array_equal(out_copy, img))

    # Odd element count (3*5*7*3 = 315, not a multiple of 128) exercising the
    # wrapper-side pad-to-lane path instead of a full-array-in-VMEM fallback.
    odd = jax.random.normal(k2, (3, 5, 7, 3), dtype=jnp.float32)
    out_odd = image_concat_embedder(odd, materialize=True)
    jax.block_until_ready(out_odd)
    assert out_odd.shape == odd.shape and out_odd.dtype == odd.dtype
    assert bool(jnp.array_equal(out_odd, odd))

    print("KERNEL_OK")
</pallas_src>

<mosaic_0001>
module attributes {stable_mosaic.version = 11 : i64} {
  func.func @_copy_kernel(%arg0: i32, %arg1: memref<1x2048xf32, #tpu.memory_space<vmem>>, %arg2: memref<1x2048xf32, #tpu.memory_space<vmem>>) attributes {dimension_semantics = [#tpu.dimension_semantics<parallel>], iteration_bounds = array<i64: 1>, scalar_prefetch = 0 : i64, scratch_operands = 0 : i64, tpu.core_type = #tpu.core_type<tc>, window_params = [{transform_indices = @transform_0, window_bounds = array<i64: 1, 2048>}, {transform_indices = @transform_1, window_bounds = array<i64: 1, 2048>}]} {
    %c0 = arith.constant 0 : index
    %c0_0 = arith.constant 0 : index
    %0 = vector.load %arg1[%c0, %c0_0] : memref<1x2048xf32, #tpu.memory_space<vmem>>, vector<1x2048xf32>
    %c0_1 = arith.constant 0 : index
    %c0_2 = arith.constant 0 : index
    %1 = vector.load %arg2[%c0_1, %c0_2] : memref<1x2048xf32, #tpu.memory_space<vmem>>, vector<1x2048xf32>
    tpu.vector_store %arg2[%c0_1, %c0_2], %0 {strides = array<i32>} : memref<1x2048xf32, #tpu.memory_space<vmem>>, vector<1x2048xf32>,
    return
  }
  func.func @transform_0(%arg0: i32) -> (i32, i32) {
    %c0_i32 = arith.constant 0 : i32
    %c0_i32_0 = arith.constant 0 : i32
    return %arg0, %c0_i32 : i32, i32
  }
  func.func @transform_1(%arg0: i32) -> (i32, i32) {
    %c0_i32 = arith.constant 0 : i32
    %c0_i32_0 = arith.constant 0 : i32
    return %arg0, %c0_i32 : i32, i32
  }
}

</mosaic_0001>

<llo_original>
// kernel: tpu_custom_call.1
$region0: #{tpu_custom_call.1}
  #allocation0 [shape = 'u32[]', space=smem, size = 0x4, offset = 0x4, fixed_abs, tag = 'smem constant byte address 0x4 - core index']
  #allocation1 [shape = 'u32[144,128]{1,0:T(1,128)}', space=vmem, size = 0x12000, scoped, tag = 'internal scratch']
  %s0 = inlined_call_operand.hbm [shape: f32[1,2048], index: 0, kind: input, shape index: {}]
  %s1 = inlined_call_operand.hbm [shape: f32[1,2048], index: 1, kind: output, shape index: {}]
  %s2 = sld [smem:[#allocation0]]
  $region18: #{tpu_custom_call.1} parent=0
    _
  %s4 = ssub.s32 1, %s2
  %s5 = scalar_select 0, %s4, %s2
  $region1: #{tpu_custom_call.1} parent=0
    #allocation2 [shape = 'u8[8192]{0}', space=vmem, size = 0x2000, scoped, tag = 'input window, operand 0, single buffered']
    #allocation3 [shape = 's32[1]{0}', space=sflag, size = 0x4, scoped, tag = 'scoped memory for tpu_custom_call.1']
    #allocation4 [shape = 's32[1]{0}', space=sflag, size = 0x4, scoped, tag = 'scoped memory for tpu_custom_call.1']
    #allocation5 [shape = 'u8[8192]{0}', space=vmem, size = 0x2000, scoped, tag = 'output window, operand 0, single buffered']
    %6 = vsyncpa [#allocation3], 0
    %7 = vsyncpa [#allocation4], 0
    // Predicated region
    $region2: #{tpu_custom_call.1} parent=1 // pred_check
      _
    $region3: #{tpu_custom_call.1} parent=1 // pred_check_branch
      %9 = sbr.rel (0) target = $region5
    $region4: #{tpu_custom_call.1} parent=1 // pred_region
      %s11 = ssub.s32 256, 256
      %12 = vsyncadd [#allocation3], %s11
      %s14 = sshll.u32 [#allocation2], 4
      %s15 = int_to_ptr.vmem [resolvable:$true] %s14
      %17 = dma.hbm_to_vmem [thread:$0]  %s0, 256, %s15, [#allocation3]
    $region5: #{tpu_custom_call.1} parent=1 // pred_fallthru
      _
    // Predicated region
    $region6: #{tpu_custom_call.1} parent=1 // pred_check
      _
    $region7: #{tpu_custom_call.1} parent=1 // pred_check_branch
      %19 = sbr.rel (0) target = $region9
    $region8: #{tpu_custom_call.1} parent=1 // pred_region
      %20 = dma.done [#allocation3], 256
    $region9: #{tpu_custom_call.1} parent=1 // pred_fallthru
      _
    %v21 = vld [vmem:[#allocation2] sm:$0xff]
    %v22 = vld [vmem:[#allocation2 + $0x8] sm:$0xff]
    %23 = vst [vmem:[#allocation5] sm:$0xff] %v21
    %24 = vst [vmem:[#allocation5 + $0x8] sm:$0xff] %v22
    // Predicated region
    $region10: #{tpu_custom_call.1} parent=1 // pred_check
      _
    $region11: #{tpu_custom_call.1} parent=1 // pred_check_branch
      %26 = sbr.rel (0) target = $region13
    $region12: #{tpu_custom_call.1} parent=1 // pred_region
      %s28 = ssub.s32 256, 256
      %29 = vsyncadd [#allocation4], %s28
      %s31 = sshll.u32 [#allocation5], 4
      %s32 = int_to_ptr.vmem [resolvable:$true] %s31
      %34 = dma.vmem_to_hbm [thread:$0]  %s32, 256, %s1, [#allocation4]
    $region13: #{tpu_custom_call.1} parent=1 // pred_fallthru
      _
    // Predicated region
    $region14: #{tpu_custom_call.1} parent=1 // pred_check
      _
    $region15: #{tpu_custom_call.1} parent=1 // pred_check_branch
      %36 = sbr.rel (0) target = $region17
    $region16: #{tpu_custom_call.1} parent=1 // pred_region
      %37 = dma.done [#allocation4], 256
    $region17: #{tpu_custom_call.1} parent=1 // pred_fallthru
      _
    %38 = vsyncpa [#allocation3], 1
    %39 = vsyncpa [#allocation4], 1

</llo_original>
